<compile_context>
chip_gen: v5e
topology: v5e:2x2
jax: 0.10.0
libtpu: 0.0.40
codegen_flags: <defaults>
</compile_context>

<pallas_src>
import math

import jax
import jax.numpy as jnp
from jax.experimental import pallas as pl
from jax.experimental.pallas import tpu as pltpu

LANE = 128  # TPU lane width; pad channel/class dims to this for dense stores.


# ---------------------------------------------------------------------------
# Fused Pallas kernel: projection matmul -> shift-add conv -> ReLU -> max-pool
# -> FC (+bias), single lane-dense store.
# ---------------------------------------------------------------------------
def _make_fused_kernel(N, W, kernel_sizes):
    n_branches = len(kernel_sizes)

    def kernel(x_ref, w_ref, cb_ref, fcw_ref, fcb_ref, o_ref):
        # x: (N*W, D)  w: (D, n_taps*LANE)  cb: (n_branches, LANE)
        # fcw: (n_branches, LANE, LANE)  fcb: (1, LANE)  ->  o: (N, LANE)

        # One big matmul: every (branch, tap) projection for every (sample, pos).
        q = jnp.dot(x_ref[...], w_ref[...],
                    preferred_element_type=jnp.float32)        # (N*W, n_taps*LANE)

        pooled = []          # per branch: (N, LANE) max-pooled ReLU features
        tap0 = 0
        for b, k in enumerate(kernel_sizes):
            T = W - k + 1
            bias = cb_ref[b:b + 1, :]                            # (1, LANE)
            rows = []
            for n in range(N):                                   # trace-time unrolled; VPU-only
                base = n * W
                acc = q[base:base + T, tap0 * LANE:(tap0 + 1) * LANE]
                for j in range(1, k):
                    col = (tap0 + j) * LANE
                    acc = acc + q[base + j:base + j + T, col:col + LANE]
                s = jnp.maximum(acc + bias, 0.0)                 # ReLU(conv + bias)
                rows.append(jnp.max(s, axis=0, keepdims=True))   # max over time -> (1, LANE)
            pooled.append(jnp.concatenate(rows, axis=0))         # (N, LANE)
            tap0 += k

        # Fused FC: logits = fcb + sum_b pooled_b @ fcw_b   (zero-padded, lane-dense)
        logits = fcb_ref[...]                                    # (1, LANE), broadcasts
        for b in range(n_branches):
            logits = logits + jnp.dot(pooled[b], fcw_ref[b],
                                      preferred_element_type=jnp.float32)
        o_ref[...] = logits                                      # single (N, LANE) store

    return kernel


def _fused_conv_pool_fc(emb2, w_all, cb, fcw, fcb, *, N, W, kernel_sizes):
    NW, D = emb2.shape
    n_taps = sum(kernel_sizes)
    n_branches = len(kernel_sizes)
    kernel = _make_fused_kernel(N, W, kernel_sizes)
    return pl.pallas_call(
        kernel,
        out_shape=jax.ShapeDtypeStruct((N, LANE), jnp.float32),
        grid=(1,),
        in_specs=[
            pl.BlockSpec((NW, D), lambda i: (0, 0)),
            pl.BlockSpec((D, n_taps * LANE), lambda i: (0, 0)),
            pl.BlockSpec((n_branches, LANE), lambda i: (0, 0)),
            pl.BlockSpec((n_branches, LANE, LANE), lambda i: (0, 0, 0)),
            pl.BlockSpec((1, LANE), lambda i: (0, 0)),
        ],
        out_specs=pl.BlockSpec((N, LANE), lambda i: (0, 0)),
        compiler_params=pltpu.CompilerParams(dimension_semantics=("arbitrary",)),
    )(emb2, w_all, cb, fcw, fcb)


# ---------------------------------------------------------------------------
# Parameter init (PyTorch-canonical layouts) and one-time packing for the kernel
# ---------------------------------------------------------------------------
def init_params(key, in_channels, out_channels, voca_size, embed_dim,
                num_classes, kernel_sizes):
    assert in_channels == 1, "forward() unsqueezes the channel dim to 1"
    keys = jax.random.split(key, 3 + 2 * len(kernel_sizes))
    params = {}
    # nn.Embedding weight replaced by the provided embedding_weight (synthetic here)
    params["embedding"] = jax.random.normal(keys[0], (voca_size, embed_dim), jnp.float32)

    conv_w, conv_b = [], []
    for n, k in enumerate(kernel_sizes):
        fan_in = in_channels * k * embed_dim
        fan_out = out_channels * k * embed_dim
        std = math.sqrt(2.0 / (fan_in + fan_out))                 # xavier_normal_
        w4 = std * jax.random.normal(
            keys[3 + 2 * n], (out_channels, in_channels, k, embed_dim), jnp.float32)
        conv_w.append(w4)                                         # (C, 1, k, D)
        bound = 1.0 / math.sqrt(fan_in)                           # default conv bias init
        conv_b.append(jax.random.uniform(
            keys[4 + 2 * n], (out_channels,), jnp.float32, -bound, bound))
    params["conv_w"] = conv_w
    params["conv_b"] = conv_b

    F = len(kernel_sizes) * out_channels
    params["fc_w"] = 0.01 * jax.random.normal(keys[1], (num_classes, F), jnp.float32)
    params["fc_b"] = 0.01 * jax.random.normal(keys[2], (num_classes,), jnp.float32)
    return params


def pack_params(params, kernel_sizes):
    """Build the lane-dense, zero-padded tensors consumed by the fused kernel."""
    D = params["embedding"].shape[1]
    C = params["conv_b"][0].shape[0]
    num_classes = params["fc_b"].shape[0]
    n_branches = len(kernel_sizes)

    # Conv taps: column block g = (branch offset + j) holds w4[c, 0, j, :] in lane c.
    slabs, cb_rows = [], []
    for b, k in enumerate(kernel_sizes):
        w4 = params["conv_w"][b]                                   # (C, 1, k, D)
        for j in range(k):
            slab = jnp.zeros((D, LANE), jnp.float32).at[:, :C].set(w4[:, 0, j, :].T)
            slabs.append(slab)
        cb_rows.append(jnp.zeros((LANE,), jnp.float32).at[:C].set(params["conv_b"][b]))
    w_all = jnp.concatenate(slabs, axis=1)                         # (D, sum(k)*LANE)
    cb = jnp.stack(cb_rows, axis=0)                                # (n_branches, LANE)

    # FC weight split per branch, zero-padded to (LANE, LANE).
    fcT = params["fc_w"].T                                         # (F, num_classes)
    fcw = jnp.zeros((n_branches, LANE, LANE), jnp.float32)
    for b in range(n_branches):
        fcw = fcw.at[b, :C, :num_classes].set(fcT[b * C:(b + 1) * C, :])
    fcb = jnp.zeros((1, LANE), jnp.float32).at[0, :num_classes].set(params["fc_b"])

    return {"embedding": params["embedding"], "w_all": w_all, "cb": cb,
            "fcw": fcw, "fcb": fcb, "num_classes": num_classes}


# ---------------------------------------------------------------------------
# Forward pass (embedding gather is plain-JAX glue; everything else in Pallas)
# ---------------------------------------------------------------------------
def cnn_classifier_forward(packed, x_tokens, kernel_sizes):
    N, W = x_tokens.shape
    emb = packed["embedding"][x_tokens]                            # (N, W, D) gather
    D = emb.shape[-1]
    emb2 = emb.reshape(N * W, D)                                   # one lane-minor slab
    logits_pad = _fused_conv_pool_fc(
        emb2, packed["w_all"], packed["cb"], packed["fcw"], packed["fcb"],
        N=N, W=W, kernel_sizes=kernel_sizes)
    # TODO(synk): nn.Dropout is identity in eval mode; stochastic training-mode
    # dropout is not implemented.
    return logits_pad[:, :packed["num_classes"]]                   # (N, num_classes)


def reference_forward(params, x_tokens, kernel_sizes):
    # pure-JAX reference mirroring the PyTorch module
    emb = params["embedding"][x_tokens]                            # (N, W, D)
    N, W, D = emb.shape
    feats = []
    for b, k in enumerate(kernel_sizes):
        w4 = params["conv_w"][b][:, 0]                             # (C, k, D)
        bias = params["conv_b"][b]                                 # (C,)
        T = W - k + 1
        idx = jnp.arange(T)[:, None] + jnp.arange(k)[None, :]
        win = emb[:, idx, :]                                       # (N, T, k, D)
        s = jnp.einsum("ntkd,ckd->ntc", win, w4,
                       precision=jax.lax.Precision.HIGHEST) + bias
        feats.append(jnp.max(jnp.maximum(s, 0.0), axis=1))         # (N, C)
    feat = jnp.concatenate(feats, axis=1)                          # (N, F)
    return jnp.dot(feat, params["fc_w"].T,
                   precision=jax.lax.Precision.HIGHEST) + params["fc_b"]


if __name__ == "__main__":
    in_channels = 1
    out_channels = 8
    voca_size = 50
    embed_dim = 16
    num_classes = 4
    kernel_sizes = (3, 4, 5)
    dropout_p = 0.5  # unused at inference
    N, W = 2, 12

    key = jax.random.PRNGKey(0)
    k_tok, k_par = jax.random.split(key)
    params = init_params(k_par, in_channels, out_channels, voca_size,
                         embed_dim, num_classes, kernel_sizes)
    packed = pack_params(params, kernel_sizes)
    x = jax.random.randint(k_tok, (N, W), 0, voca_size, jnp.int32)

    out = jax.block_until_ready(cnn_classifier_forward(packed, x, kernel_sizes))
    ref = reference_forward(params, x, kernel_sizes)

    assert out.shape == (N, num_classes)
    assert jnp.allclose(out, ref, rtol=1e-3, atol=1e-3)
    print("KERNEL_OK")
</pallas_src>

<mosaic_0001>
module attributes {stable_mosaic.version = 11 : i64} {
  func.func @kernel(%arg0: i32, %arg1: memref<24x16xf32, #tpu.memory_space<vmem>>, %arg2: memref<16x1536xf32, #tpu.memory_space<vmem>>, %arg3: memref<3x128xf32, #tpu.memory_space<vmem>>, %arg4: memref<3x128x128xf32, #tpu.memory_space<vmem>>, %arg5: memref<1x128xf32, #tpu.memory_space<vmem>>, %arg6: memref<2x128xf32, #tpu.memory_space<vmem>>) attributes {dimension_semantics = [#tpu.dimension_semantics<arbitrary>], iteration_bounds = array<i64: 1>, scalar_prefetch = 0 : i64, scratch_operands = 0 : i64, tpu.core_type = #tpu.core_type<tc>, window_params = [{pipeline_mode = #tpu.pipeline_mode<synchronous>, transform_indices = @transform_0, window_bounds = array<i64: 24, 16>}, {pipeline_mode = #tpu.pipeline_mode<synchronous>, transform_indices = @transform_1, window_bounds = array<i64: 16, 1536>}, {pipeline_mode = #tpu.pipeline_mode<synchronous>, transform_indices = @transform_2, window_bounds = array<i64: 3, 128>}, {pipeline_mode = #tpu.pipeline_mode<synchronous>, transform_indices = @transform_3, window_bounds = array<i64: 3, 128, 128>}, {pipeline_mode = #tpu.pipeline_mode<synchronous>, transform_indices = @transform_4, window_bounds = array<i64: 1, 128>}, {pipeline_mode = #tpu.pipeline_mode<synchronous>, transform_indices = @transform_5, window_bounds = array<i64: 2, 128>}]} {
    %c0 = arith.constant 0 : index
    %c0_0 = arith.constant 0 : index
    %0 = vector.load %arg1[%c0, %c0_0] : memref<24x16xf32, #tpu.memory_space<vmem>>, vector<24x16xf32>
    %c0_1 = arith.constant 0 : index
    %c0_2 = arith.constant 0 : index
    %1 = vector.load %arg2[%c0_1, %c0_2] : memref<16x1536xf32, #tpu.memory_space<vmem>>, vector<16x1536xf32>
    %cst = arith.constant dense<0.000000e+00> : vector<24x1536xf32>
    %2 = tpu.matmul %0, %1, %cst {dimension_numbers = #tpu.dot_dimension_numbers<[1], [0], [0], [1], [0, 0, 1, 1], [], []>} : vector<24x16xf32>, vector<16x1536xf32>, vector<24x1536xf32> -> vector<24x1536xf32>
    %c0_3 = arith.constant 0 : index
    %c0_4 = arith.constant 0 : index
    %3 = vector.load %arg3[%c0_3, %c0_4] : memref<3x128xf32, #tpu.memory_space<vmem>>, vector<1x128xf32>
    %4 = vector.extract_strided_slice %2 {offsets = [0, 0], sizes = [10, 128], strides = [1, 1]} : vector<24x1536xf32> to vector<10x128xf32>
    %5 = vector.extract_strided_slice %2 {offsets = [1, 128], sizes = [10, 128], strides = [1, 1]} : vector<24x1536xf32> to vector<10x128xf32>
    %6 = arith.addf %4, %5 : vector<10x128xf32>
    %7 = vector.extract_strided_slice %2 {offsets = [2, 256], sizes = [10, 128], strides = [1, 1]} : vector<24x1536xf32> to vector<10x128xf32>
    %8 = arith.addf %6, %7 : vector<10x128xf32>
    %9 = vector.broadcast %3 : vector<1x128xf32> to vector<10x128xf32>
    %10 = arith.addf %8, %9 : vector<10x128xf32>
    %cst_5 = arith.constant 0.000000e+00 : f32
    %11 = vector.broadcast %cst_5 : f32 to vector<10x128xf32>
    %12 = arith.maximumf %10, %11 : vector<10x128xf32>
    %cst_6 = arith.constant dense<0xFF800000> : vector<128xf32>
    %13 = vector.multi_reduction <maximumf>, %12, %cst_6 [0] : vector<10x128xf32> to vector<128xf32>
    %14 = vector.shape_cast %13 : vector<128xf32> to vector<1x128xf32>
    %15 = vector.extract_strided_slice %2 {offsets = [12, 0], sizes = [10, 128], strides = [1, 1]} : vector<24x1536xf32> to vector<10x128xf32>
    %16 = vector.extract_strided_slice %2 {offsets = [13, 128], sizes = [10, 128], strides = [1, 1]} : vector<24x1536xf32> to vector<10x128xf32>
    %17 = arith.addf %15, %16 : vector<10x128xf32>
    %18 = vector.extract_strided_slice %2 {offsets = [14, 256], sizes = [10, 128], strides = [1, 1]} : vector<24x1536xf32> to vector<10x128xf32>
    %19 = arith.addf %17, %18 : vector<10x128xf32>
    %20 = vector.broadcast %3 : vector<1x128xf32> to vector<10x128xf32>
    %21 = arith.addf %19, %20 : vector<10x128xf32>
    %cst_7 = arith.constant 0.000000e+00 : f32
    %22 = vector.broadcast %cst_7 : f32 to vector<10x128xf32>
    %23 = arith.maximumf %21, %22 : vector<10x128xf32>
    %cst_8 = arith.constant dense<0xFF800000> : vector<128xf32>
    %24 = vector.multi_reduction <maximumf>, %23, %cst_8 [0] : vector<10x128xf32> to vector<128xf32>
    %25 = vector.shape_cast %24 : vector<128xf32> to vector<1x128xf32>
    %26 = tpu.concatenate %14, %25 in 0 : vector<1x128xf32>, vector<1x128xf32> -> vector<2x128xf32>
    %c1 = arith.constant 1 : index
    %c0_9 = arith.constant 0 : index
    %27 = vector.load %arg3[%c1, %c0_9] : memref<3x128xf32, #tpu.memory_space<vmem>>, vector<1x128xf32>
    %28 = vector.extract_strided_slice %2 {offsets = [0, 384], sizes = [9, 128], strides = [1, 1]} : vector<24x1536xf32> to vector<9x128xf32>
    %29 = vector.extract_strided_slice %2 {offsets = [1, 512], sizes = [9, 128], strides = [1, 1]} : vector<24x1536xf32> to vector<9x128xf32>
    %30 = arith.addf %28, %29 : vector<9x128xf32>
    %31 = vector.extract_strided_slice %2 {offsets = [2, 640], sizes = [9, 128], strides = [1, 1]} : vector<24x1536xf32> to vector<9x128xf32>
    %32 = arith.addf %30, %31 : vector<9x128xf32>
    %33 = vector.extract_strided_slice %2 {offsets = [3, 768], sizes = [9, 128], strides = [1, 1]} : vector<24x1536xf32> to vector<9x128xf32>
    %34 = arith.addf %32, %33 : vector<9x128xf32>
    %35 = vector.broadcast %27 : vector<1x128xf32> to vector<9x128xf32>
    %36 = arith.addf %34, %35 : vector<9x128xf32>
    %cst_10 = arith.constant 0.000000e+00 : f32
    %37 = vector.broadcast %cst_10 : f32 to vector<9x128xf32>
    %38 = arith.maximumf %36, %37 : vector<9x128xf32>
    %cst_11 = arith.constant dense<0xFF800000> : vector<128xf32>
    %39 = vector.multi_reduction <maximumf>, %38, %cst_11 [0] : vector<9x128xf32> to vector<128xf32>
    %40 = vector.shape_cast %39 : vector<128xf32> to vector<1x128xf32>
    %41 = vector.extract_strided_slice %2 {offsets = [12, 384], sizes = [9, 128], strides = [1, 1]} : vector<24x1536xf32> to vector<9x128xf32>
    %42 = vector.extract_strided_slice %2 {offsets = [13, 512], sizes = [9, 128], strides = [1, 1]} : vector<24x1536xf32> to vector<9x128xf32>
    %43 = arith.addf %41, %42 : vector<9x128xf32>
    %44 = vector.extract_strided_slice %2 {offsets = [14, 640], sizes = [9, 128], strides = [1, 1]} : vector<24x1536xf32> to vector<9x128xf32>
    %45 = arith.addf %43, %44 : vector<9x128xf32>
    %46 = vector.extract_strided_slice %2 {offsets = [15, 768], sizes = [9, 128], strides = [1, 1]} : vector<24x1536xf32> to vector<9x128xf32>
    %47 = arith.addf %45, %46 : vector<9x128xf32>
    %48 = vector.broadcast %27 : vector<1x128xf32> to vector<9x128xf32>
    %49 = arith.addf %47, %48 : vector<9x128xf32>
    %cst_12 = arith.constant 0.000000e+00 : f32
    %50 = vector.broadcast %cst_12 : f32 to vector<9x128xf32>
    %51 = arith.maximumf %49, %50 : vector<9x128xf32>
    %cst_13 = arith.constant dense<0xFF800000> : vector<128xf32>
    %52 = vector.multi_reduction <maximumf>, %51, %cst_13 [0] : vector<9x128xf32> to vector<128xf32>
    %53 = vector.shape_cast %52 : vector<128xf32> to vector<1x128xf32>
    %54 = tpu.concatenate %40, %53 in 0 : vector<1x128xf32>, vector<1x128xf32> -> vector<2x128xf32>
    %c2 = arith.constant 2 : index
    %c0_14 = arith.constant 0 : index
    %55 = vector.load %arg3[%c2, %c0_14] : memref<3x128xf32, #tpu.memory_space<vmem>>, vector<1x128xf32>
    %56 = vector.extract_strided_slice %2 {offsets = [0, 896], sizes = [8, 128], strides = [1, 1]} : vector<24x1536xf32> to vector<8x128xf32>
    %57 = vector.extract_strided_slice %2 {offsets = [1, 1024], sizes = [8, 128], strides = [1, 1]} : vector<24x1536xf32> to vector<8x128xf32>
    %58 = arith.addf %56, %57 : vector<8x128xf32>
    %59 = vector.extract_strided_slice %2 {offsets = [2, 1152], sizes = [8, 128], strides = [1, 1]} : vector<24x1536xf32> to vector<8x128xf32>
    %60 = arith.addf %58, %59 : vector<8x128xf32>
    %61 = vector.extract_strided_slice %2 {offsets = [3, 1280], sizes = [8, 128], strides = [1, 1]} : vector<24x1536xf32> to vector<8x128xf32>
    %62 = arith.addf %60, %61 : vector<8x128xf32>
    %63 = vector.extract_strided_slice %2 {offsets = [4, 1408], sizes = [8, 128], strides = [1, 1]} : vector<24x1536xf32> to vector<8x128xf32>
    %64 = arith.addf %62, %63 : vector<8x128xf32>
    %65 = vector.broadcast %55 : vector<1x128xf32> to vector<8x128xf32>
    %66 = arith.addf %64, %65 : vector<8x128xf32>
    %cst_15 = arith.constant 0.000000e+00 : f32
    %67 = vector.broadcast %cst_15 : f32 to vector<8x128xf32>
    %68 = arith.maximumf %66, %67 : vector<8x128xf32>
    %cst_16 = arith.constant dense<0xFF800000> : vector<128xf32>
    %69 = vector.multi_reduction <maximumf>, %68, %cst_16 [0] : vector<8x128xf32> to vector<128xf32>
    %70 = vector.shape_cast %69 : vector<128xf32> to vector<1x128xf32>
    %71 = vector.extract_strided_slice %2 {offsets = [12, 896], sizes = [8, 128], strides = [1, 1]} : vector<24x1536xf32> to vector<8x128xf32>
    %72 = vector.extract_strided_slice %2 {offsets = [13, 1024], sizes = [8, 128], strides = [1, 1]} : vector<24x1536xf32> to vector<8x128xf32>
    %73 = arith.addf %71, %72 : vector<8x128xf32>
    %74 = vector.extract_strided_slice %2 {offsets = [14, 1152], sizes = [8, 128], strides = [1, 1]} : vector<24x1536xf32> to vector<8x128xf32>
    %75 = arith.addf %73, %74 : vector<8x128xf32>
    %76 = vector.extract_strided_slice %2 {offsets = [15, 1280], sizes = [8, 128], strides = [1, 1]} : vector<24x1536xf32> to vector<8x128xf32>
    %77 = arith.addf %75, %76 : vector<8x128xf32>
    %78 = vector.extract_strided_slice %2 {offsets = [16, 1408], sizes = [8, 128], strides = [1, 1]} : vector<24x1536xf32> to vector<8x128xf32>
    %79 = arith.addf %77, %78 : vector<8x128xf32>
    %80 = vector.broadcast %55 : vector<1x128xf32> to vector<8x128xf32>
    %81 = arith.addf %79, %80 : vector<8x128xf32>
    %cst_17 = arith.constant 0.000000e+00 : f32
    %82 = vector.broadcast %cst_17 : f32 to vector<8x128xf32>
    %83 = arith.maximumf %81, %82 : vector<8x128xf32>
    %cst_18 = arith.constant dense<0xFF800000> : vector<128xf32>
    %84 = vector.multi_reduction <maximumf>, %83, %cst_18 [0] : vector<8x128xf32> to vector<128xf32>
    %85 = vector.shape_cast %84 : vector<128xf32> to vector<1x128xf32>
    %86 = tpu.concatenate %70, %85 in 0 : vector<1x128xf32>, vector<1x128xf32> -> vector<2x128xf32>
    %c0_19 = arith.constant 0 : index
    %c0_20 = arith.constant 0 : index
    %87 = vector.load %arg5[%c0_19, %c0_20] : memref<1x128xf32, #tpu.memory_space<vmem>>, vector<1x128xf32>
    %c0_21 = arith.constant 0 : index
    %c0_22 = arith.constant 0 : index
    %c0_23 = arith.constant 0 : index
    %88 = vector.load %arg4[%c0_21, %c0_22, %c0_23] : memref<3x128x128xf32, #tpu.memory_space<vmem>>, vector<1x128x128xf32>
    %89 = vector.shape_cast %88 : vector<1x128x128xf32> to vector<128x128xf32>
    %cst_24 = arith.constant dense<0.000000e+00> : vector<2x128xf32>
    %90 = tpu.matmul %26, %89, %cst_24 {dimension_numbers = #tpu.dot_dimension_numbers<[1], [0], [0], [1], [0, 0, 1, 1], [], []>} : vector<2x128xf32>, vector<128x128xf32>, vector<2x128xf32> -> vector<2x128xf32>
    %91 = vector.broadcast %87 : vector<1x128xf32> to vector<2x128xf32>
    %92 = arith.addf %91, %90 : vector<2x128xf32>
    %c1_25 = arith.constant 1 : index
    %c0_26 = arith.constant 0 : index
    %c0_27 = arith.constant 0 : index
    %93 = vector.load %arg4[%c1_25, %c0_26, %c0_27] : memref<3x128x128xf32, #tpu.memory_space<vmem>>, vector<1x128x128xf32>
    %94 = vector.shape_cast %93 : vector<1x128x128xf32> to vector<128x128xf32>
    %cst_28 = arith.constant dense<0.000000e+00> : vector<2x128xf32>
    %95 = tpu.matmul %54, %94, %cst_28 {dimension_numbers = #tpu.dot_dimension_numbers<[1], [0], [0], [1], [0, 0, 1, 1], [], []>} : vector<2x128xf32>, vector<128x128xf32>, vector<2x128xf32> -> vector<2x128xf32>
    %96 = arith.addf %92, %95 : vector<2x128xf32>
    %c2_29 = arith.constant 2 : index
    %c0_30 = arith.constant 0 : index
    %c0_31 = arith.constant 0 : index
    %97 = vector.load %arg4[%c2_29, %c0_30, %c0_31] : memref<3x128x128xf32, #tpu.memory_space<vmem>>, vector<1x128x128xf32>
    %98 = vector.shape_cast %97 : vector<1x128x128xf32> to vector<128x128xf32>
    %cst_32 = arith.constant dense<0.000000e+00> : vector<2x128xf32>
    %99 = tpu.matmul %86, %98, %cst_32 {dimension_numbers = #tpu.dot_dimension_numbers<[1], [0], [0], [1], [0, 0, 1, 1], [], []>} : vector<2x128xf32>, vector<128x128xf32>, vector<2x128xf32> -> vector<2x128xf32>
    %100 = arith.addf %96, %99 : vector<2x128xf32>
    %c0_33 = arith.constant 0 : index
    %c0_34 = arith.constant 0 : index
    %101 = vector.load %arg6[%c0_33, %c0_34] : memref<2x128xf32, #tpu.memory_space<vmem>>, vector<2x128xf32>
    tpu.vector_store %arg6[%c0_33, %c0_34], %100 {strides = array<i32>} : memref<2x128xf32, #tpu.memory_space<vmem>>, vector<2x128xf32>,
    return
  }
  func.func @transform_0(%arg0: i32) -> (i32, i32) {
    %c0_i32 = arith.constant 0 : i32
    %c0_i32_0 = arith.constant 0 : i32
    %c0_i32_1 = arith.constant 0 : i32
    return %c0_i32, %c0_i32_0 : i32, i32
  }
  func.func @transform_1(%arg0: i32) -> (i32, i32) {
    %c0_i32 = arith.constant 0 : i32
    %c0_i32_0 = arith.constant 0 : i32
    %c0_i32_1 = arith.constant 0 : i32
    return %c0_i32, %c0_i32_0 : i32, i32
  }
  func.func @transform_2(%arg0: i32) -> (i32, i32) {
    %c0_i32 = arith.constant 0 : i32
    %c0_i32_0 = arith.constant 0 : i32
    %c0_i32_1 = arith.constant 0 : i32
    return %c0_i32, %c0_i32_0 : i32, i32
  }
  func.func @transform_3(%arg0: i32) -> (i32, i32, i32) {
    %c0_i32 = arith.constant 0 : i32
    %c0_i32_0 = arith.constant 0 : i32
    %c0_i32_1 = arith.constant 0 : i32
    %c0_i32_2 = arith.constant 0 : i32
    return %c0_i32, %c0_i32_0, %c0_i32_1 : i32, i32, i32
  }
  func.func @transform_4(%arg0: i32) -> (i32, i32) {
    %c0_i32 = arith.constant 0 : i32
    %c0_i32_0 = arith.constant 0 : i32
    %c0_i32_1 = arith.constant 0 : i32
    return %c0_i32, %c0_i32_0 : i32, i32
  }
  func.func @transform_5(%arg0: i32) -> (i32, i32) {
    %c0_i32 = arith.constant 0 : i32
    %c0_i32_0 = arith.constant 0 : i32
    %c0_i32_1 = arith.constant 0 : i32
    return %c0_i32, %c0_i32_0 : i32, i32
  }
}

</mosaic_0001>

<llo_original>
// kernel: tpu_custom_call.1
$region0: #{tpu_custom_call.1}
  #allocation0 [shape = 'u32[]', space=smem, size = 0x4, offset = 0x4, fixed_abs, tag = 'smem constant byte address 0x4 - core index']
  #allocation1 [shape = 'u32[72,128]{1,0:T(1,128)}', space=vmem, size = 0x9000, scoped, tag = 'internal scratch']
  %s0 = inlined_call_operand.vmem [shape: f32[24,16], index: 0, kind: input, shape index: {}]
  %s1 = inlined_call_operand.hbm [shape: f32[16,1536], index: 1, kind: input, shape index: {}]
  %s2 = inlined_call_operand.vmem [shape: f32[3,128], index: 2, kind: input, shape index: {}]
  %s3 = inlined_call_operand.hbm [shape: f32[3,128,128], index: 3, kind: input, shape index: {}]
  %s4 = inlined_call_operand.vmem [shape: f32[1,128], index: 4, kind: input, shape index: {}]
  %s5 = inlined_call_operand.hbm [shape: f32[2,128], index: 5, kind: output, shape index: {}]
  %s6 = sld [smem:[#allocation0]]
  $region38: #{tpu_custom_call.1} parent=0
    _
  %s8 = ssub.s32 1, %s6
  %s9 = scalar_select 0, %s8, %s6
  $region1: #{tpu_custom_call.1} parent=0
    #allocation2 [shape = 'u8[98304]{0}', space=vmem, size = 0x18000, scoped, tag = 'input window, operand 1, single buffered']
    #allocation3 [shape = 's32[1]{0}', space=sflag, size = 0x4, scoped, tag = 'scoped memory for tpu_custom_call.1']
    #allocation4 [shape = 's32[1]{0}', space=sflag, size = 0x4, scoped, tag = 'scoped memory for tpu_custom_call.1']
    #allocation5 [shape = 'u8[196608]{0}', space=vmem, size = 0x30000, scoped, tag = 'input window, operand 3, single buffered']
    #allocation6 [shape = 's32[1]{0}', space=sflag, size = 0x4, scoped, tag = 'scoped memory for tpu_custom_call.1']
    #allocation7 [shape = 'u8[1024]{0}', space=vmem, size = 0x400, scoped, tag = 'output window, operand 0, single buffered']
    %10 = vsyncpa [#allocation3], 0
    %11 = vsyncpa [#allocation6], 0
    %12 = vsyncpa [#allocation4], 0
    // Predicated region
    $region2: #{tpu_custom_call.1} parent=1 // pred_check
      _
    $region3: #{tpu_custom_call.1} parent=1 // pred_check_branch
      %14 = sbr.rel (0) target = $region5
    $region4: #{tpu_custom_call.1} parent=1 // pred_region
      _
    $region5: #{tpu_custom_call.1} parent=1 // pred_fallthru
      _
    // Predicated region
    $region6: #{tpu_custom_call.1} parent=1 // pred_check
      _
    $region7: #{tpu_custom_call.1} parent=1 // pred_check_branch
      %16 = sbr.rel (0) target = $region9
    $region8: #{tpu_custom_call.1} parent=1 // pred_region
      %18 = vsyncadd [#allocation3], 0
      %s19 = sshll.u32 %s1, 4
      %s20 = int_to_ptr.hbm [resolvable:$true] %s19
      %s21 = sshll.u32 [#allocation2], 4
      %s22 = int_to_ptr.vmem [resolvable:$true] %s21
      %27 = dma.hbm_to_vmem [thread:$0]  %s20, 3072, %s22, [#allocation3], 1536, 1536, 96
    $region9: #{tpu_custom_call.1} parent=1 // pred_fallthru
      _
    // Predicated region
    $region10: #{tpu_custom_call.1} parent=1 // pred_check
      _
    $region11: #{tpu_custom_call.1} parent=1 // pred_check_branch
      %29 = sbr.rel (0) target = $region13
    $region12: #{tpu_custom_call.1} parent=1 // pred_region
      _
    $region13: #{tpu_custom_call.1} parent=1 // pred_fallthru
      _
    // Predicated region
    $region14: #{tpu_custom_call.1} parent=1 // pred_check
      _
    $region15: #{tpu_custom_call.1} parent=1 // pred_check_branch
      %31 = sbr.rel (0) target = $region17
    $region16: #{tpu_custom_call.1} parent=1 // pred_region
      %33 = vsyncadd [#allocation6], 0
      %s34 = sshll.u32 %s3, 4
      %s35 = int_to_ptr.hbm [resolvable:$true] %s34
      %s36 = sshll.u32 [#allocation5], 4
      %s37 = int_to_ptr.vmem [resolvable:$true] %s36
      %42 = dma.hbm_to_vmem [thread:$0]  %s35, 6144, %s37, [#allocation6], 128, 128, 8
    $region17: #{tpu_custom_call.1} parent=1 // pred_fallthru
      _
    // Predicated region
    $region18: #{tpu_custom_call.1} parent=1 // pred_check
      _
    $region19: #{tpu_custom_call.1} parent=1 // pred_check_branch
      %44 = sbr.rel (0) target = $region21
    $region20: #{tpu_custom_call.1} parent=1 // pred_region
      _
    $region21: #{tpu_custom_call.1} parent=1 // pred_fallthru
      _
    // Predicated region
    $region22: #{tpu_custom_call.1} parent=1 // pred_check
      _
    $region23: #{tpu_custom_call.1} parent=1 // pred_check_branch
      %46 = sbr.rel (0) target = $region25
    $region24: #{tpu_custom_call.1} parent=1 // pred_region
      %48 = dma.done [#allocation3], 3072
    $region25: #{tpu_custom_call.1} parent=1 // pred_fallthru
      _
    // Predicated region
    $region26: #{tpu_custom_call.1} parent=1 // pred_check
      _
    $region27: #{tpu_custom_call.1} parent=1 // pred_check_branch
      %50 = sbr.rel (0) target = $region29
    $region28: #{tpu_custom_call.1} parent=1 // pred_region
      %52 = dma.done [#allocation6], 6144
    $region29: #{tpu_custom_call.1} parent=1 // pred_fallthru
      _
    %v53 = vld [vmem:[%s0] sm:$0xff]
    %v54 = vld [vmem:[%s0 + $0x8] sm:$0xff]
    %v55 = vld [vmem:[%s0 + $0x10] sm:$0xff]
    %v56 = vld [vmem:[#allocation2] sm:$0xff]
    %v57 = vld [vmem:[#allocation2 + $0x8] sm:$0xff]
    %v58 = vld [vmem:[#allocation2 + $0x10] sm:$0xff]
    %v59 = vld [vmem:[#allocation2 + $0x18] sm:$0xff]
    %v60 = vld [vmem:[#allocation2 + $0x20] sm:$0xff]
    %v61 = vld [vmem:[#allocation2 + $0x28] sm:$0xff]
    %v62 = vld [vmem:[#allocation2 + $0x30] sm:$0xff]
    %v63 = vld [vmem:[#allocation2 + $0x38] sm:$0xff]
    %v64 = vld [vmem:[#allocation2 + $0x40] sm:$0xff]
    %v65 = vld [vmem:[#allocation2 + $0x48] sm:$0xff]
    %v66 = vld [vmem:[#allocation2 + $0x50] sm:$0xff]
    %v67 = vld [vmem:[#allocation2 + $0x58] sm:$0xff]
    %v68 = vld [vmem:[#allocation2 + $0x60] sm:$0xff]
    %v69 = vld [vmem:[#allocation2 + $0x68] sm:$0xff]
    %v70 = vld [vmem:[#allocation2 + $0x70] sm:$0xff]
    %v71 = vld [vmem:[#allocation2 + $0x78] sm:$0xff]
    %v72 = vld [vmem:[#allocation2 + $0x80] sm:$0xff]
    %v73 = vld [vmem:[#allocation2 + $0x88] sm:$0xff]
    %v74 = vld [vmem:[#allocation2 + $0x90] sm:$0xff]
    %v75 = vld [vmem:[#allocation2 + $0x98] sm:$0xff]
    %v76 = vld [vmem:[#allocation2 + $0xa0] sm:$0xff]
    %v77 = vld [vmem:[#allocation2 + $0xa8] sm:$0xff]
    %v78 = vld [vmem:[#allocation2 + $0xb0] sm:$0xff]
    %v79 = vld [vmem:[#allocation2 + $0xb8] sm:$0xff]
    %vm80 = vcmask 130048
    %v82 = vsel %vm80, %v53, 0
    %v85 = vsel %vm80, %v54, 0
    %v88 = vsel %vm80, %v55, 0
    %90 = vmatpush.msra.mxu0 0.0
    %91 = vmatpush.msra.mxu0 0.0
    %92 = vmatpush.msra.mxu0 0.0
    %93 = vmatpush.msra.mxu0 0.0
    %94 = vmatpush.msra.mxu0 0.0
    %95 = vmatpush.msra.mxu0 0.0
    %96 = vmatpush.msra.mxu0 0.0
    %97 = vmatpush.msra.mxu0 0.0
    %98 = vmatpush.msra.mxu0 0.0
    %99 = vmatpush.msra.mxu0 0.0
    %100 = vmatpush.msra.mxu0 0.0
    %101 = vmatpush.msra.mxu0 0.0
    %102 = vmatpush.msra.mxu0 0.0
    %103 = vmatpush.msra.mxu0 0.0
    %104 = vmatpush.msra.mxu0 %v68
    %105 = vmatpush.msra.mxu0 %v56
    %106 = vmatmul.f32.gmra.mxu0 %v82
    %v107 = vpop.f32.mrf.mxu0
    %v108 = vadd.f32 0.0, %v107
    %109 = vmatmul.f32.gmra.mxu0 %v85
    %v110 = vpop.f32.mrf.mxu0
    %v111 = vadd.f32 0.0, %v110
    %112 = vmatmul.f32.gmra.mxu0 %v88
    %v113 = vpop.f32.mrf.mxu0
    %v114 = vadd.f32 0.0, %v113
    %115 = vdwg.mxu0
    %116 = vmatpush.msra.mxu0 0.0
    %117 = vmatpush.msra.mxu0 0.0
    %118 = vmatpush.msra.mxu0 0.0
    %119 = vmatpush.msra.mxu0 0.0
    %120 = vmatpush.msra.mxu0 0.0
    %121 = vmatpush.msra.mxu0 0.0
    %122 = vmatpush.msra.mxu0 0.0
    %123 = vmatpush.msra.mxu0 0.0
    %124 = vmatpush.msra.mxu0 0.0
    %125 = vmatpush.msra.mxu0 0.0
    %126 = vmatpush.msra.mxu0 0.0
    %127 = vmatpush.msra.mxu0 0.0
    %128 = vmatpush.msra.mxu0 0.0
    %129 = vmatpush.msra.mxu0 0.0
    %130 = vmatpush.msra.mxu0 %v69
    %131 = vmatpush.msra.mxu0 %v57
    %132 = vmatmul.f32.gmra.mxu0 %v82
    %v133 = vpop.f32.mrf.mxu0
    %v134 = vadd.f32 0.0, %v133
    %135 = vmatmul.f32.gmra.mxu0 %v85
    %v136 = vpop.f32.mrf.mxu0
    %v137 = vadd.f32 0.0, %v136
    %138 = vmatmul.f32.gmra.mxu0 %v88
    %v139 = vpop.f32.mrf.mxu0
    %v140 = vadd.f32 0.0, %v139
    %141 = vdwg.mxu0
    %142 = vmatpush.msra.mxu0 0.0
    %143 = vmatpush.msra.mxu0 0.0
    %144 = vmatpush.msra.mxu0 0.0
    %145 = vmatpush.msra.mxu0 0.0
    %146 = vmatpush.msra.mxu0 0.0
    %147 = vmatpush.msra.mxu0 0.0
    %148 = vmatpush.msra.mxu0 0.0
    %149 = vmatpush.msra.mxu0 0.0
    %150 = vmatpush.msra.mxu0 0.0
    %151 = vmatpush.msra.mxu0 0.0
    %152 = vmatpush.msra.mxu0 0.0
    %153 = vmatpush.msra.mxu0 0.0
    %154 = vmatpush.msra.mxu0 0.0
    %155 = vmatpush.msra.mxu0 0.0
    %156 = vmatpush.msra.mxu0 %v70
    %157 = vmatpush.msra.mxu0 %v58
    %158 = vmatmul.f32.gmra.mxu0 %v82
    %v159 = vpop.f32.mrf.mxu0
    %v160 = vadd.f32 0.0, %v159
    %161 = vmatmul.f32.gmra.mxu0 %v85
    %v162 = vpop.f32.mrf.mxu0
    %v163 = vadd.f32 0.0, %v162
    %164 = vmatmul.f32.gmra.mxu0 %v88
    %v165 = vpop.f32.mrf.mxu0
    %v166 = vadd.f32 0.0, %v165
    %167 = vdwg.mxu0
    %168 = vmatpush.msra.mxu0 0.0
    %169 = vmatpush.msra.mxu0 0.0
    %170 = vmatpush.msra.mxu0 0.0
    %171 = vmatpush.msra.mxu0 0.0
    %172 = vmatpush.msra.mxu0 0.0
    %173 = vmatpush.msra.mxu0 0.0
    %174 = vmatpush.msra.mxu0 0.0
    %175 = vmatpush.msra.mxu0 0.0
    %176 = vmatpush.msra.mxu0 0.0
    %177 = vmatpush.msra.mxu0 0.0
    %178 = vmatpush.msra.mxu0 0.0
    %179 = vmatpush.msra.mxu0 0.0
    %180 = vmatpush.msra.mxu0 0.0
    %181 = vmatpush.msra.mxu0 0.0
    %182 = vmatpush.msra.mxu0 %v71
    %183 = vmatpush.msra.mxu0 %v59
    %184 = vmatmul.f32.gmra.mxu0 %v82
    %v185 = vpop.f32.mrf.mxu0
    %v186 = vadd.f32 0.0, %v185
    %187 = vmatmul.f32.gmra.mxu0 %v85
    %v188 = vpop.f32.mrf.mxu0
    %v189 = vadd.f32 0.0, %v188
    %190 = vmatmul.f32.gmra.mxu0 %v88
    %v191 = vpop.f32.mrf.mxu0
    %v192 = vadd.f32 0.0, %v191
    %193 = vdwg.mxu0
    %194 = vmatpush.msra.mxu0 0.0
    %195 = vmatpush.msra.mxu0 0.0
    %196 = vmatpush.msra.mxu0 0.0
    %197 = vmatpush.msra.mxu0 0.0
    %198 = vmatpush.msra.mxu0 0.0
    %199 = vmatpush.msra.mxu0 0.0
    %200 = vmatpush.msra.mxu0 0.0
    %201 = vmatpush.msra.mxu0 0.0
    %202 = vmatpush.msra.mxu0 0.0
    %203 = vmatpush.msra.mxu0 0.0
    %204 = vmatpush.msra.mxu0 0.0
    %205 = vmatpush.msra.mxu0 0.0
    %206 = vmatpush.msra.mxu0 0.0
    %207 = vmatpush.msra.mxu0 0.0
    %208 = vmatpush.msra.mxu0 %v72
    %209 = vmatpush.msra.mxu0 %v60
    %210 = vmatmul.f32.gmra.mxu0 %v82
    %v211 = vpop.f32.mrf.mxu0
    %v212 = vadd.f32 0.0, %v211
    %213 = vmatmul.f32.gmra.mxu0 %v85
    %v214 = vpop.f32.mrf.mxu0
    %v215 = vadd.f32 0.0, %v214
    %216 = vmatmul.f32.gmra.mxu0 %v88
    %v217 = vpop.f32.mrf.mxu0
    %v218 = vadd.f32 0.0, %v217
    %219 = vdwg.mxu0
    %220 = vmatpush.msra.mxu0 0.0
    %221 = vmatpush.msra.mxu0 0.0
    %222 = vmatpush.msra.mxu0 0.0
    %223 = vmatpush.msra.mxu0 0.0
    %224 = vmatpush.msra.mxu0 0.0
    %225 = vmatpush.msra.mxu0 0.0
    %226 = vmatpush.msra.mxu0 0.0
    %227 = vmatpush.msra.mxu0 0.0
    %228 = vmatpush.msra.mxu0 0.0
    %229 = vmatpush.msra.mxu0 0.0
    %230 = vmatpush.msra.mxu0 0.0
    %231 = vmatpush.msra.mxu0 0.0
    %232 = vmatpush.msra.mxu0 0.0
    %233 = vmatpush.msra.mxu0 0.0
    %234 = vmatpush.msra.mxu0 %v73
    %235 = vmatpush.msra.mxu0 %v61
    %236 = vmatmul.f32.gmra.mxu0 %v82
    %v237 = vpop.f32.mrf.mxu0
    %v238 = vadd.f32 0.0, %v237
    %239 = vmatmul.f32.gmra.mxu0 %v85
    %v240 = vpop.f32.mrf.mxu0
    %v241 = vadd.f32 0.0, %v240
    %242 = vmatmul.f32.gmra.mxu0 %v88
    %v243 = vpop.f32.mrf.mxu0
    %v244 = vadd.f32 0.0, %v243
    %245 = vdwg.mxu0
    %246 = vmatpush.msra.mxu0 0.0
    %247 = vmatpush.msra.mxu0 0.0
    %248 = vmatpush.msra.mxu0 0.0
    %249 = vmatpush.msra.mxu0 0.0
    %250 = vmatpush.msra.mxu0 0.0
    %251 = vmatpush.msra.mxu0 0.0
    %252 = vmatpush.msra.mxu0 0.0
    %253 = vmatpush.msra.mxu0 0.0
    %254 = vmatpush.msra.mxu0 0.0
    %255 = vmatpush.msra.mxu0 0.0
    %256 = vmatpush.msra.mxu0 0.0
    %257 = vmatpush.msra.mxu0 0.0
    %258 = vmatpush.msra.mxu0 0.0
    %259 = vmatpush.msra.mxu0 0.0
    %260 = vmatpush.msra.mxu0 %v74
    %261 = vmatpush.msra.mxu0 %v62
    %262 = vmatmul.f32.gmra.mxu0 %v82
    %v263 = vpop.f32.mrf.mxu0
    %v264 = vadd.f32 0.0, %v263
    %265 = vmatmul.f32.gmra.mxu0 %v85
    %v266 = vpop.f32.mrf.mxu0
    %v267 = vadd.f32 0.0, %v266
    %268 = vmatmul.f32.gmra.mxu0 %v88
    %v269 = vpop.f32.mrf.mxu0
    %v270 = vadd.f32 0.0, %v269
    %271 = vdwg.mxu0
    %272 = vmatpush.msra.mxu0 0.0
    %273 = vmatpush.msra.mxu0 0.0
    %274 = vmatpush.msra.mxu0 0.0
    %275 = vmatpush.msra.mxu0 0.0
    %276 = vmatpush.msra.mxu0 0.0
    %277 = vmatpush.msra.mxu0 0.0
    %278 = vmatpush.msra.mxu0 0.0
    %279 = vmatpush.msra.mxu0 0.0
    %280 = vmatpush.msra.mxu0 0.0
    %281 = vmatpush.msra.mxu0 0.0
    %282 = vmatpush.msra.mxu0 0.0
    %283 = vmatpush.msra.mxu0 0.0
    %284 = vmatpush.msra.mxu0 0.0
    %285 = vmatpush.msra.mxu0 0.0
    %286 = vmatpush.msra.mxu0 %v75
    %287 = vmatpush.msra.mxu0 %v63
    %288 = vmatmul.f32.gmra.mxu0 %v82
    %v289 = vpop.f32.mrf.mxu0
    %v290 = vadd.f32 0.0, %v289
    %291 = vmatmul.f32.gmra.mxu0 %v85
    %v292 = vpop.f32.mrf.mxu0
    %v293 = vadd.f32 0.0, %v292
    %294 = vmatmul.f32.gmra.mxu0 %v88
    %v295 = vpop.f32.mrf.mxu0
    %v296 = vadd.f32 0.0, %v295
    %297 = vdwg.mxu0
    %298 = vmatpush.msra.mxu0 0.0
    %299 = vmatpush.msra.mxu0 0.0
    %300 = vmatpush.msra.mxu0 0.0
    %301 = vmatpush.msra.mxu0 0.0
    %302 = vmatpush.msra.mxu0 0.0
    %303 = vmatpush.msra.mxu0 0.0
    %304 = vmatpush.msra.mxu0 0.0
    %305 = vmatpush.msra.mxu0 0.0
    %306 = vmatpush.msra.mxu0 0.0
    %307 = vmatpush.msra.mxu0 0.0
    %308 = vmatpush.msra.mxu0 0.0
    %309 = vmatpush.msra.mxu0 0.0
    %310 = vmatpush.msra.mxu0 0.0
    %311 = vmatpush.msra.mxu0 0.0
    %312 = vmatpush.msra.mxu0 %v76
    %313 = vmatpush.msra.mxu0 %v64
    %314 = vmatmul.f32.gmra.mxu0 %v82
    %v315 = vpop.f32.mrf.mxu0
    %v316 = vadd.f32 0.0, %v315
    %317 = vmatmul.f32.gmra.mxu0 %v85
    %v318 = vpop.f32.mrf.mxu0
    %v319 = vadd.f32 0.0, %v318
    %320 = vmatmul.f32.gmra.mxu0 %v88
    %v321 = vpop.f32.mrf.mxu0
    %v322 = vadd.f32 0.0, %v321
    %323 = vdwg.mxu0
    %324 = vmatpush.msra.mxu0 0.0
    %325 = vmatpush.msra.mxu0 0.0
    %326 = vmatpush.msra.mxu0 0.0
    %327 = vmatpush.msra.mxu0 0.0
    %328 = vmatpush.msra.mxu0 0.0
    %329 = vmatpush.msra.mxu0 0.0
    %330 = vmatpush.msra.mxu0 0.0
    %331 = vmatpush.msra.mxu0 0.0
    %332 = vmatpush.msra.mxu0 0.0
    %333 = vmatpush.msra.mxu0 0.0
    %334 = vmatpush.msra.mxu0 0.0
    %335 = vmatpush.msra.mxu0 0.0
    %336 = vmatpush.msra.mxu0 0.0
    %337 = vmatpush.msra.mxu0 0.0
    %338 = vmatpush.msra.mxu0 %v77
    %339 = vmatpush.msra.mxu0 %v65
    %340 = vmatmul.f32.gmra.mxu0 %v82
    %v341 = vpop.f32.mrf.mxu0
    %v342 = vadd.f32 0.0, %v341
    %343 = vmatmul.f32.gmra.mxu0 %v85
    %v344 = vpop.f32.mrf.mxu0
    %v345 = vadd.f32 0.0, %v344
    %346 = vmatmul.f32.gmra.mxu0 %v88
    %v347 = vpop.f32.mrf.mxu0
    %v348 = vadd.f32 0.0, %v347
    %349 = vdwg.mxu0
    %350 = vmatpush.msra.mxu0 0.0
    %351 = vmatpush.msra.mxu0 0.0
    %352 = vmatpush.msra.mxu0 0.0
    %353 = vmatpush.msra.mxu0 0.0
    %354 = vmatpush.msra.mxu0 0.0
    %355 = vmatpush.msra.mxu0 0.0
    %356 = vmatpush.msra.mxu0 0.0
    %357 = vmatpush.msra.mxu0 0.0
    %358 = vmatpush.msra.mxu0 0.0
    %359 = vmatpush.msra.mxu0 0.0
    %360 = vmatpush.msra.mxu0 0.0
    %361 = vmatpush.msra.mxu0 0.0
    %362 = vmatpush.msra.mxu0 0.0
    %363 = vmatpush.msra.mxu0 0.0
    %364 = vmatpush.msra.mxu0 %v78
    %365 = vmatpush.msra.mxu0 %v66
    %366 = vmatmul.f32.gmra.mxu0 %v82
    %v367 = vpop.f32.mrf.mxu0
    %v368 = vadd.f32 0.0, %v367
    %369 = vmatmul.f32.gmra.mxu0 %v85
    %v370 = vpop.f32.mrf.mxu0
    %v371 = vadd.f32 0.0, %v370
    %372 = vmatmul.f32.gmra.mxu0 %v88
    %v373 = vpop.f32.mrf.mxu0
    %v374 = vadd.f32 0.0, %v373
    %375 = vdwg.mxu0
    %376 = vmatpush.msra.mxu0 0.0
    %377 = vmatpush.msra.mxu0 0.0
    %378 = vmatpush.msra.mxu0 0.0
    %379 = vmatpush.msra.mxu0 0.0
    %380 = vmatpush.msra.mxu0 0.0
    %381 = vmatpush.msra.mxu0 0.0
    %382 = vmatpush.msra.mxu0 0.0
    %383 = vmatpush.msra.mxu0 0.0
    %384 = vmatpush.msra.mxu0 0.0
    %385 = vmatpush.msra.mxu0 0.0
    %386 = vmatpush.msra.mxu0 0.0
    %387 = vmatpush.msra.mxu0 0.0
    %388 = vmatpush.msra.mxu0 0.0
    %389 = vmatpush.msra.mxu0 0.0
    %390 = vmatpush.msra.mxu0 %v79
    %391 = vmatpush.msra.mxu0 %v67
    %392 = vmatmul.f32.gmra.mxu0 %v82
    %v393 = vpop.f32.mrf.mxu0
    %v394 = vadd.f32 0.0, %v393
    %395 = vmatmul.f32.gmra.mxu0 %v85
    %v396 = vpop.f32.mrf.mxu0
    %v397 = vadd.f32 0.0, %v396
    %398 = vmatmul.f32.gmra.mxu0 %v88
    %v399 = vpop.f32.mrf.mxu0
    %v400 = vadd.f32 0.0, %v399
    %401 = vdwg.mxu0
    %v402 = vld [vmem:[%s2] sm:$0x1]
    %vm405 = vcmask 1046528
    %v406 = vrot.slane %v134, 1
    %v407 = vrot.slane %v137, 1
    %v408 = vsel %vm405, %v406, %v407
    %v411 = vadd.f32 %v108, %v408
    %v412 = vadd.f32 %v111, %v407
    %vm415 = vcmask 1045504
    %v416 = vrot.slane %v160, 2
    %v417 = vrot.slane %v163, 2
    %v418 = vsel %vm415, %v416, %v417
    %v421 = vadd.f32 %v411, %v418
    %v422 = vadd.f32 %v412, %v417
    %v423 = vperm.slane %v402, 0
    %v424 = vadd.f32 %v421, %v423
    %v425 = vadd.f32 %v422, %v423
    %v426 = vmax.f32 %v424, 0.0
    %v427 = vmax.f32 %v425, 0.0
    %vm428 = vcmask 1041408
    %v429 = vsel %vm428, %v427, -inf
    %v430 = vmax.f32 %v426, %v429
    %v431 = vrot.slane %v430, 4
    %v432 = vmax.f32 %v430, %v431
    %v433 = vrot.slane %v432, 2
    %v434 = vmax.f32 %v432, %v433
    %v435 = vrot.slane %v434, 1
    %v436 = vmax.f32 %v434, %v435
    %v438 = vrot.slane %v140, 1
    %v439 = vsel %vm405, %v407, %v438
    %v442 = vadd.f32 %v111, %v439
    %v443 = vadd.f32 %v114, %v438
    %v445 = vrot.slane %v166, 2
    %v446 = vsel %vm415, %v417, %v445
    %v449 = vadd.f32 %v442, %v446
    %v450 = vadd.f32 %v443, %v445
    %v451 = vadd.f32 %v449, %v423
    %v452 = vadd.f32 %v450, %v423
    %v453 = vmax.f32 %v451, 0.0
    %v454 = vmax.f32 %v452, 0.0
    %vm455 = vcmask 1047556
    %v456 = vsel %vm455, %v453, -inf
    %v457 = vsel %vm415, %v454, -inf
    %v458 = vmax.f32 %v456, %v457
    %v459 = vrot.slane %v458, 4
    %v460 = vmax.f32 %v458, %v459
    %v461 = vrot.slane %v460, 2
    %v462 = vmax.f32 %v460, %v461
    %v463 = vrot.slane %v462, 1
    %v464 = vmax.f32 %v462, %v463
    %vm465 = vcmask 1040384
    %v466 = vsel %vm465, %v436, %v464
    %v467 = vld [vmem:[%s2 + $0x1] sm:$0x1]
    %v470 = vrot.slane %v212, 1
    %v471 = vrot.slane %v215, 1
    %v472 = vsel %vm405, %v470, %v471
    %v475 = vadd.f32 %v186, %v472
    %v476 = vadd.f32 %v189, %v471
    %v479 = vrot.slane %v238, 2
    %v480 = vrot.slane %v241, 2
    %v481 = vsel %vm415, %v479, %v480
    %v484 = vadd.f32 %v475, %v481
    %v485 = vadd.f32 %v476, %v480
    %vm488 = vcmask 1044480
    %v489 = vrot.slane %v264, 3
    %v490 = vrot.slane %v267, 3
    %v491 = vsel %vm488, %v489, %v490
    %v494 = vadd.f32 %v484, %v491
    %v495 = vadd.f32 %v485, %v490
    %v496 = vperm.slane %v467, 0
    %v497 = vadd.f32 %v494, %v496
    %v498 = vadd.f32 %v495, %v496
    %v499 = vmax.f32 %v497, 0.0
    %v500 = vmax.f32 %v498, 0.0
    %v501 = vsel %vm465, %v500, -inf
    %v502 = vmax.f32 %v499, %v501
    %v503 = vrot.slane %v502, 4
    %v504 = vmax.f32 %v502, %v503
    %v505 = vrot.slane %v504, 2
    %v506 = vmax.f32 %v504, %v505
    %v507 = vrot.slane %v506, 1
    %v508 = vmax.f32 %v506, %v507
    %v510 = vrot.slane %v218, 1
    %v511 = vsel %vm405, %v471, %v510
    %v514 = vadd.f32 %v189, %v511
    %v515 = vadd.f32 %v192, %v510
    %v517 = vrot.slane %v244, 2
    %v518 = vsel %vm415, %v480, %v517
    %v521 = vadd.f32 %v514, %v518
    %v522 = vadd.f32 %v515, %v517
    %v524 = vrot.slane %v270, 3
    %v525 = vsel %vm488, %v490, %v524
    %v528 = vadd.f32 %v521, %v525
    %v529 = vadd.f32 %v522, %v524
    %v530 = vadd.f32 %v528, %v496
    %v531 = vadd.f32 %v529, %v496
    %v532 = vmax.f32 %v530, 0.0
    %v533 = vmax.f32 %v531, 0.0
    %v534 = vsel %vm455, %v532, -inf
    %v535 = vsel %vm488, %v533, -inf
    %v536 = vmax.f32 %v534, %v535
    %v537 = vrot.slane %v536, 4
    %v538 = vmax.f32 %v536, %v537
    %v539 = vrot.slane %v538, 2
    %v540 = vmax.f32 %v538, %v539
    %v541 = vrot.slane %v540, 1
    %v542 = vmax.f32 %v540, %v541
    %v543 = vsel %vm465, %v508, %v542
    %v544 = vld [vmem:[%s2 + $0x2] sm:$0x1]
    %v547 = vrot.slane %v316, 1
    %v548 = vrot.slane %v319, 1
    %v549 = vsel %vm405, %v547, %v548
    %v551 = vadd.f32 %v290, %v549
    %v554 = vrot.slane %v342, 2
    %v555 = vrot.slane %v345, 2
    %v556 = vsel %vm415, %v554, %v555
    %v558 = vadd.f32 %v551, %v556
    %v561 = vrot.slane %v368, 3
    %v562 = vrot.slane %v371, 3
    %v563 = vsel %vm488, %v561, %v562
    %v565 = vadd.f32 %v558, %v563
    %vm568 = vcmask 1043456
    %v569 = vrot.slane %v394, 4
    %v570 = vrot.slane %v397, 4
    %v571 = vsel %vm568, %v569, %v570
    %v573 = vadd.f32 %v565, %v571
    %v574 = vperm.slane %v544, 0
    %v575 = vadd.f32 %v573, %v574
    %v576 = vmax.f32 %v575, 0.0
    %v577 = vrot.slane %v576, 4
    %v578 = vmax.f32 %v576, %v577
    %v579 = vrot.slane %v578, 2
    %v580 = vmax.f32 %v578, %v579
    %v581 = vrot.slane %v580, 1
    %v582 = vmax.f32 %v580, %v581
    %v584 = vrot.slane %v322, 1
    %v585 = vsel %vm405, %v548, %v584
    %v588 = vadd.f32 %v293, %v585
    %v589 = vadd.f32 %v296, %v584
    %v591 = vrot.slane %v348, 2
    %v592 = vsel %vm415, %v555, %v591
    %v595 = vadd.f32 %v588, %v592
    %v596 = vadd.f32 %v589, %v591
    %v598 = vrot.slane %v374, 3
    %v599 = vsel %vm488, %v562, %v598
    %v602 = vadd.f32 %v595, %v599
    %v603 = vadd.f32 %v596, %v598
    %v605 = vrot.slane %v400, 4
    %v607 = vadd.f32 %v602, %v605
    %v608 = vadd.f32 %v603, %v605
    %v609 = vadd.f32 %v607, %v574
    %v610 = vadd.f32 %v608, %v574
    %v611 = vmax.f32 %v609, 0.0
    %v612 = vmax.f32 %v610, 0.0
    %v613 = vsel %vm455, %v611, -inf
    %v614 = vsel %vm568, %v612, -inf
    %v615 = vmax.f32 %v613, %v614
    %v616 = vrot.slane %v615, 4
    %v617 = vmax.f32 %v615, %v616
    %v618 = vrot.slane %v617, 2
    %v619 = vmax.f32 %v617, %v618
    %v620 = vrot.slane %v619, 1
    %v621 = vmax.f32 %v619, %v620
    %v622 = vsel %vm465, %v582, %v621
    %v623 = vld [vmem:[%s4] sm:$0x1]
    %v624 = vld [vmem:[#allocation5] sm:$0xff]
    %v625 = vld [vmem:[#allocation5 + $0x8] sm:$0xff]
    %v626 = vld [vmem:[#allocation5 + $0x10] sm:$0xff]
    %v627 = vld [vmem:[#allocation5 + $0x18] sm:$0xff]
    %v628 = vld [vmem:[#allocation5 + $0x20] sm:$0xff]
    %v629 = vld [vmem:[#allocation5 + $0x28] sm:$0xff]
    %v630 = vld [vmem:[#allocation5 + $0x30] sm:$0xff]
    %v631 = vld [vmem:[#allocation5 + $0x38] sm:$0xff]
    %v632 = vld [vmem:[#allocation5 + $0x40] sm:$0xff]
    %v633 = vld [vmem:[#allocation5 + $0x48] sm:$0xff]
    %v634 = vld [vmem:[#allocation5 + $0x50] sm:$0xff]
    %v635 = vld [vmem:[#allocation5 + $0x58] sm:$0xff]
    %v636 = vld [vmem:[#allocation5 + $0x60] sm:$0xff]
    %v637 = vld [vmem:[#allocation5 + $0x68] sm:$0xff]
    %v638 = vld [vmem:[#allocation5 + $0x70] sm:$0xff]
    %v639 = vld [vmem:[#allocation5 + $0x78] sm:$0xff]
    %640 = vmatpush.msra.mxu0 %v639
    %641 = vmatpush.msra.mxu0 %v638
    %642 = vmatpush.msra.mxu0 %v637
    %643 = vmatpush.msra.mxu0 %v636
    %644 = vmatpush.msra.mxu0 %v635
    %645 = vmatpush.msra.mxu0 %v634
    %646 = vmatpush.msra.mxu0 %v633
    %647 = vmatpush.msra.mxu0 %v632
    %648 = vmatpush.msra.mxu0 %v631
    %649 = vmatpush.msra.mxu0 %v630
    %650 = vmatpush.msra.mxu0 %v629
    %651 = vmatpush.msra.mxu0 %v628
    %652 = vmatpush.msra.mxu0 %v627
    %653 = vmatpush.msra.mxu0 %v626
    %654 = vmatpush.msra.mxu0 %v625
    %655 = vmatpush.msra.mxu0 %v624
    %656 = vmatmul.f32.gmra.mxu0 %v466
    %v657 = vpop.f32.mrf.mxu0
    %v658 = vadd.f32 0.0, %v657
    %659 = vdwg.mxu0
    %v661 = vperm.slane %v623, 0
    %v663 = vadd.f32 %v661, %v658
    %s664 = scalar_lea.vmem [#allocation5], 128
    %v665 = vld [vmem:[%s664] sm:$0xff]
    %v666 = vld [vmem:[%s664 + $0x8] sm:$0xff]
    %v667 = vld [vmem:[%s664 + $0x10] sm:$0xff]
    %v668 = vld [vmem:[%s664 + $0x18] sm:$0xff]
    %v669 = vld [vmem:[%s664 + $0x20] sm:$0xff]
    %v670 = vld [vmem:[%s664 + $0x28] sm:$0xff]
    %v671 = vld [vmem:[%s664 + $0x30] sm:$0xff]
    %v672 = vld [vmem:[%s664 + $0x38] sm:$0xff]
    %v673 = vld [vmem:[%s664 + $0x40] sm:$0xff]
    %v674 = vld [vmem:[%s664 + $0x48] sm:$0xff]
    %v675 = vld [vmem:[%s664 + $0x50] sm:$0xff]
    %v676 = vld [vmem:[%s664 + $0x58] sm:$0xff]
    %v677 = vld [vmem:[%s664 + $0x60] sm:$0xff]
    %v678 = vld [vmem:[%s664 + $0x68] sm:$0xff]
    %v679 = vld [vmem:[%s664 + $0x70] sm:$0xff]
    %v680 = vld [vmem:[%s664 + $0x78] sm:$0xff]
    %681 = vmatpush.msra.mxu0 %v680
    %682 = vmatpush.msra.mxu0 %v679
    %683 = vmatpush.msra.mxu0 %v678
    %684 = vmatpush.msra.mxu0 %v677
    %685 = vmatpush.msra.mxu0 %v676
    %686 = vmatpush.msra.mxu0 %v675
    %687 = vmatpush.msra.mxu0 %v674
    %688 = vmatpush.msra.mxu0 %v673
    %689 = vmatpush.msra.mxu0 %v672
    %690 = vmatpush.msra.mxu0 %v671
    %691 = vmatpush.msra.mxu0 %v670
    %692 = vmatpush.msra.mxu0 %v669
    %693 = vmatpush.msra.mxu0 %v668
    %694 = vmatpush.msra.mxu0 %v667
    %695 = vmatpush.msra.mxu0 %v666
    %696 = vmatpush.msra.mxu0 %v665
    %697 = vmatmul.f32.gmra.mxu0 %v543
    %v698 = vpop.f32.mrf.mxu0
    %v699 = vadd.f32 0.0, %v698
    %700 = vdwg.mxu0
    %v701 = vadd.f32 %v663, %v699
    %s702 = scalar_lea.vmem [#allocation5], 256
    %v703 = vld [vmem:[%s702] sm:$0xff]
    %v704 = vld [vmem:[%s702 + $0x8] sm:$0xff]
    %v705 = vld [vmem:[%s702 + $0x10] sm:$0xff]
    %v706 = vld [vmem:[%s702 + $0x18] sm:$0xff]
    %v707 = vld [vmem:[%s702 + $0x20] sm:$0xff]
    %v708 = vld [vmem:[%s702 + $0x28] sm:$0xff]
    %v709 = vld [vmem:[%s702 + $0x30] sm:$0xff]
    %v710 = vld [vmem:[%s702 + $0x38] sm:$0xff]
    %v711 = vld [vmem:[%s702 + $0x40] sm:$0xff]
    %v712 = vld [vmem:[%s702 + $0x48] sm:$0xff]
    %v713 = vld [vmem:[%s702 + $0x50] sm:$0xff]
    %v714 = vld [vmem:[%s702 + $0x58] sm:$0xff]
    %v715 = vld [vmem:[%s702 + $0x60] sm:$0xff]
    %v716 = vld [vmem:[%s702 + $0x68] sm:$0xff]
    %v717 = vld [vmem:[%s702 + $0x70] sm:$0xff]
    %v718 = vld [vmem:[%s702 + $0x78] sm:$0xff]
    %719 = vmatpush.msra.mxu0 %v718
    %720 = vmatpush.msra.mxu0 %v717
    %721 = vmatpush.msra.mxu0 %v716
    %722 = vmatpush.msra.mxu0 %v715
    %723 = vmatpush.msra.mxu0 %v714
    %724 = vmatpush.msra.mxu0 %v713
    %725 = vmatpush.msra.mxu0 %v712
    %726 = vmatpush.msra.mxu0 %v711
    %727 = vmatpush.msra.mxu0 %v710
    %728 = vmatpush.msra.mxu0 %v709
    %729 = vmatpush.msra.mxu0 %v708
    %730 = vmatpush.msra.mxu0 %v707
    %731 = vmatpush.msra.mxu0 %v706
    %732 = vmatpush.msra.mxu0 %v705
    %733 = vmatpush.msra.mxu0 %v704
    %734 = vmatpush.msra.mxu0 %v703
    %735 = vmatmul.f32.gmra.mxu0 %v622
    %v736 = vpop.f32.mrf.mxu0
    %v737 = vadd.f32 0.0, %v736
    %738 = vdwg.mxu0
    %v739 = vadd.f32 %v701, %v737
    %740 = vst [vmem:[#allocation7] sm:$0x3] %v739
    // Predicated region
    $region30: #{tpu_custom_call.1} parent=1 // pred_check
      _
    $region31: #{tpu_custom_call.1} parent=1 // pred_check_branch
      %742 = sbr.rel (0) target = $region33
    $region32: #{tpu_custom_call.1} parent=1 // pred_region
      %744 = vsyncadd [#allocation4], 0
      %s746 = sshll.u32 [#allocation7], 4
      %s747 = int_to_ptr.vmem [resolvable:$true] %s746
      %s748 = sshll.u32 %s5, 4
      %s749 = int_to_ptr.hbm [resolvable:$true] %s748
      %751 = dma.vmem_to_hbm [thread:$0]  %s747, 32, %s749, [#allocation4]
    $region33: #{tpu_custom_call.1} parent=1 // pred_fallthru
      _
    // Predicated region
    $region34: #{tpu_custom_call.1} parent=1 // pred_check
      _
    $region35: #{tpu_custom_call.1} parent=1 // pred_check_branch
      %753 = sbr.rel (0) target = $region37
    $region36: #{tpu_custom_call.1} parent=1 // pred_region
      %755 = dma.done [#allocation4], 32
    $region37: #{tpu_custom_call.1} parent=1 // pred_fallthru
      _
    %756 = vsyncpa [#allocation3], 1
    %757 = vsyncpa [#allocation6], 1
    %758 = vsyncpa [#allocation4], 1

</llo_original>
